<compile_context>
chip_gen: v7x
topology: tpu7x:2x2x1
jax: 0.10.0
libtpu: 0.0.40
codegen_flags: <defaults>
</compile_context>

<pallas_src>
import functools

import jax
import jax.numpy as jnp
from jax.experimental import pallas as pl
from jax.experimental.pallas import tpu as pltpu


_TK_MAX = 2048  # if E <= this, use a single K block (no reduction axis needed)


def _round_up(x, m):
    return ((x + m - 1) // m) * m


def _padded_param_sizes(E, N):
    E_pad = E if E <= _TK_MAX else _round_up(E, 512)
    N_pad = _round_up(N, 128)
    return E_pad, N_pad


def _vmem_limit_bytes():
    # ~3/4 of physical VMEM: ~96 MiB on v5e/v6e (128 MiB parts), ~48 MiB on v7x.
    try:
        info = pltpu.get_tpu_info()
        cap = getattr(info, "vmem_capacity_bytes", None)
        if cap is None:
            return None
        return max(32 << 20, min(int(cap) * 3 // 4, 112 << 20))
    except Exception:
        return None


def prepare_honeypot_params(weight, bias, *, param_dtype=None):
    """One-time parameter preparation (do this at init, not per forward call).

    weight: (num_items, embedding_dim)  [PyTorch nn.Linear layout]
    bias:   (num_items,)
    Returns:
      w_t: (E_pad, N_pad) weight, transposed + zero-padded (optionally bf16/fp8)
      b2d: (1, N_pad) float32 bias
    """
    N, E = weight.shape
    E_pad, N_pad = _padded_param_sizes(E, N)
    w_t = weight.T  # (E, N): canonical contraction layout, lane-dense N
    if param_dtype is not None:
        w_t = w_t.astype(param_dtype)
    if (E_pad, N_pad) != (E, N):
        w_t = jnp.pad(w_t, ((0, E_pad - E), (0, N_pad - N)))
    b2d = bias.astype(jnp.float32).reshape(1, N)
    if N_pad != N:
        b2d = jnp.pad(b2d, ((0, 0), (0, N_pad - N)))
    return w_t, b2d


def honeypot_kernel(x_ref, w_ref, b_ref, o_ref, acc_ref, *, compute_dtype=None):
    # x_ref: (tm, tk), w_ref: (tk, tn), b_ref: (1, tn), o_ref: (tm, tn)
    # acc_ref: (tm, tn) f32 scratch, accumulated over the K grid axis (axis 2).
    k = pl.program_id(2)

    @pl.when(k == 0)
    def _():
        acc_ref[...] = jnp.zeros_like(acc_ref)

    x = x_ref[...]
    w = w_ref[...]
    if compute_dtype is not None:
        x = x.astype(compute_dtype)
        w = w.astype(compute_dtype)
    acc_ref[...] += jnp.dot(x, w, preferred_element_type=jnp.float32)

    @pl.when(k == pl.num_programs(2) - 1)
    def _():
        o_ref[...] = (acc_ref[...] + b_ref[...].astype(jnp.float32)).astype(o_ref.dtype)


def honeypot_forward(x, w_t, b2d, *, num_items, tm=None, tn=None, tk=None,
                     compute_dtype=None):
    """Pallas forward with prepared params (see prepare_honeypot_params).

    x:   (batch, embedding_dim)
    w_t: (E_pad, N_pad)
    b2d: (1, N_pad)
    Returns: (batch, num_items) logits in x.dtype.
    """
    B, E = x.shape
    E_pad, N_pad = w_t.shape
    assert b2d.shape == (1, N_pad)
    assert E_pad >= E and N_pad >= num_items

    # --- tile sizes ---------------------------------------------------------
    if tn is None:
        tn = 256 if N_pad % 256 == 0 else 128
    assert N_pad % tn == 0
    if tk is None:
        tk = E_pad if E_pad <= _TK_MAX else 512
    assert E_pad % tk == 0
    B_pad = _round_up(B, 8)
    if tm is None:
        tm = min(256, B_pad)
    B_pad = _round_up(B_pad, tm)

    # x is the small operand: padding it per call is cheap (W is never copied).
    if (B_pad, E_pad) != (B, E):
        x_p = jnp.pad(x, ((0, B_pad - B), (0, E_pad - E)))
    else:
        x_p = x

    n_j = N_pad // tn   # num_items tiles (leading, parallel -> v7x megacore)
    n_i = B_pad // tm   # batch tiles (inner of the output axes)
    n_k = E_pad // tk   # reduction tiles (innermost, arbitrary)
    grid = (n_j, n_i, n_k)

    # --- advisory cost: W streamed once (n_k==1) or once per batch tile ------
    w_itm = jnp.dtype(w_t.dtype).itemsize
    x_itm = jnp.dtype(x.dtype).itemsize
    bytes_accessed = (
        (1 if n_k == 1 else n_i) * N_pad * E_pad * w_itm   # weight stream
        + n_j * B_pad * E_pad * x_itm                       # x re-streamed per N tile
        + B_pad * N_pad * x_itm                             # output
        + N_pad * 4                                         # bias
    )
    cost = pl.CostEstimate(flops=2 * B_pad * N_pad * E_pad, transcendentals=0,
                           bytes_accessed=bytes_accessed)

    kernel = functools.partial(honeypot_kernel, compute_dtype=compute_dtype)

    out = pl.pallas_call(
        kernel,
        out_shape=jax.ShapeDtypeStruct((B_pad, N_pad), x.dtype),
        grid_spec=pltpu.PrefetchScalarGridSpec(
            num_scalar_prefetch=0,
            grid=grid,
            in_specs=[
                pl.BlockSpec((tm, tk), lambda j, i, k: (i, k)),  # x tile
                pl.BlockSpec((tk, tn), lambda j, i, k: (k, j)),  # weight tile (E, N)
                pl.BlockSpec((1, tn), lambda j, i, k: (0, j)),   # bias tile
            ],
            out_specs=pl.BlockSpec((tm, tn), lambda j, i, k: (i, j)),
            scratch_shapes=[pltpu.VMEM((tm, tn), jnp.float32)],
        ),
        compiler_params=pltpu.CompilerParams(
            dimension_semantics=("parallel", "parallel", "arbitrary"),
            vmem_limit_bytes=_vmem_limit_bytes(),
        ),
        cost_estimate=cost,
    )(x_p, w_t, b2d)

    if B_pad != B or N_pad != num_items:
        out = out[:B, :num_items]
    return out


def honeypot_layer(x, weight, bias, **kwargs):
    """PyTorch-layout convenience wrapper: weight (num_items, E), bias (num_items,).

    Note: this transposes/pads the params on every call; for production, call
    prepare_honeypot_params once and use honeypot_forward directly.
    """
    num_items = weight.shape[0]
    w_t, b2d = prepare_honeypot_params(weight, bias)
    return honeypot_forward(x, w_t, b2d, num_items=num_items, **kwargs)


def init_honeypot_params(key, embedding_dim, num_items):
    """Matches the PyTorch module: xavier_normal_ on weight, zeros on bias."""
    fan_in, fan_out = embedding_dim, num_items
    std = (2.0 / (fan_in + fan_out)) ** 0.5
    weight = std * jax.random.normal(
        key, (num_items, embedding_dim), dtype=jnp.float32
    )
    bias = jnp.zeros((num_items,), dtype=jnp.float32)
    return weight, bias


if __name__ == "__main__":
    batch = 2
    embedding_dim = 32
    num_items = 64

    key = jax.random.PRNGKey(0)
    k_x, k_w = jax.random.split(key)

    x = jax.random.normal(k_x, (batch, embedding_dim), dtype=jnp.float32)
    weight, bias = init_honeypot_params(k_w, embedding_dim, num_items)

    ref = x @ weight.T + bias

    # Production path: one-time param prep (transpose + pad), then forward.
    w_t, b2d = prepare_honeypot_params(weight, bias)
    logits = jax.block_until_ready(
        honeypot_forward(x, w_t, b2d, num_items=num_items))
    assert logits.shape == (batch, num_items)
    assert jnp.allclose(logits, ref, atol=1e-5, rtol=1e-5)

    # PyTorch-layout convenience wrapper (same semantics).
    logits2 = jax.block_until_ready(honeypot_layer(x, weight, bias))
    assert logits2.shape == (batch, num_items)
    assert jnp.allclose(logits2, ref, atol=1e-5, rtol=1e-5)

    # bf16 weight streaming (halved HBM weight traffic), f32 accumulate.
    w_bf, b_bf = prepare_honeypot_params(weight, bias, param_dtype=jnp.bfloat16)
    logits_bf = jax.block_until_ready(
        honeypot_forward(x, w_bf, b_bf, num_items=num_items,
                         compute_dtype=jnp.bfloat16))
    assert logits_bf.shape == (batch, num_items)
    assert jnp.allclose(logits_bf, ref, atol=5e-2, rtol=5e-2)

    print("KERNEL_OK")
</pallas_src>

<mosaic_0001>
module attributes {stable_mosaic.version = 11 : i64} {
  func.func @honeypot_kernel(%arg0: i32, %arg1: i32, %arg2: i32, %arg3: memref<8x32xf32, #tpu.memory_space<vmem>>, %arg4: memref<32x128xf32, #tpu.memory_space<vmem>>, %arg5: memref<1x128xf32, #tpu.memory_space<vmem>>, %arg6: memref<8x128xf32, #tpu.memory_space<vmem>>, %arg7: memref<8x128xf32, #tpu.memory_space<vmem>>) attributes {dimension_semantics = [#tpu.dimension_semantics<parallel>, #tpu.dimension_semantics<parallel>, #tpu.dimension_semantics<arbitrary>], iteration_bounds = array<i64: 1, 1, 1>, scalar_prefetch = 0 : i64, scratch_operands = 1 : i64, tpu.core_type = #tpu.core_type<tc>, window_params = [{transform_indices = @transform_0, window_bounds = array<i64: 8, 32>}, {transform_indices = @transform_1, window_bounds = array<i64: 32, 128>}, {transform_indices = @transform_2, window_bounds = array<i64: 1, 128>}, {transform_indices = @transform_3, window_bounds = array<i64: 8, 128>}]} {
    %c0_i32 = arith.constant 0 : i32
    %0 = arith.cmpi eq, %arg2, %c0_i32 : i32
    %1 = arith.extui %0 : i1 to i32
    %c0_i32_0 = arith.constant 0 : i32
    %2 = arith.cmpi ne, %1, %c0_i32_0 : i32
    scf.if %2 {
      %cst_10 = arith.constant 0.000000e+00 : f32
      %12 = vector.broadcast %cst_10 : f32 to vector<8x128xf32>
      %c0_11 = arith.constant 0 : index
      %c0_12 = arith.constant 0 : index
      %13 = vector.load %arg7[%c0_11, %c0_12] : memref<8x128xf32, #tpu.memory_space<vmem>>, vector<8x128xf32>
      tpu.vector_store %arg7[%c0_11, %c0_12], %12 {strides = array<i32>} : memref<8x128xf32, #tpu.memory_space<vmem>>, vector<8x128xf32>,
    } else {
    }
    %c0 = arith.constant 0 : index
    %c0_1 = arith.constant 0 : index
    %3 = vector.load %arg3[%c0, %c0_1] : memref<8x32xf32, #tpu.memory_space<vmem>>, vector<8x32xf32>
    %c0_2 = arith.constant 0 : index
    %c0_3 = arith.constant 0 : index
    %4 = vector.load %arg4[%c0_2, %c0_3] : memref<32x128xf32, #tpu.memory_space<vmem>>, vector<32x128xf32>
    %c0_4 = arith.constant 0 : index
    %c0_5 = arith.constant 0 : index
    %5 = vector.load %arg7[%c0_4, %c0_5] : memref<8x128xf32, #tpu.memory_space<vmem>>, vector<8x128xf32>
    %cst = arith.constant dense<0.000000e+00> : vector<8x128xf32>
    %6 = tpu.matmul %3, %4, %cst {dimension_numbers = #tpu.dot_dimension_numbers<[1], [0], [0], [1], [0, 0, 1, 1], [], []>} : vector<8x32xf32>, vector<32x128xf32>, vector<8x128xf32> -> vector<8x128xf32>
    %7 = arith.addf %5, %6 : vector<8x128xf32>
    %c0_6 = arith.constant 0 : index
    %c0_7 = arith.constant 0 : index
    %8 = vector.load %arg7[%c0_6, %c0_7] : memref<8x128xf32, #tpu.memory_space<vmem>>, vector<8x128xf32>
    tpu.vector_store %arg7[%c0_6, %c0_7], %7 {strides = array<i32>} : memref<8x128xf32, #tpu.memory_space<vmem>>, vector<8x128xf32>,
    %c0_i32_8 = arith.constant 0 : i32
    %9 = arith.cmpi eq, %arg2, %c0_i32_8 : i32
    %10 = arith.extui %9 : i1 to i32
    %c0_i32_9 = arith.constant 0 : i32
    %11 = arith.cmpi ne, %10, %c0_i32_9 : i32
    scf.if %11 {
      %c0_10 = arith.constant 0 : index
      %c0_11 = arith.constant 0 : index
      %12 = vector.load %arg7[%c0_10, %c0_11] : memref<8x128xf32, #tpu.memory_space<vmem>>, vector<8x128xf32>
      %c0_12 = arith.constant 0 : index
      %c0_13 = arith.constant 0 : index
      %13 = vector.load %arg5[%c0_12, %c0_13] : memref<1x128xf32, #tpu.memory_space<vmem>>, vector<1x128xf32>
      %14 = vector.broadcast %13 : vector<1x128xf32> to vector<8x128xf32>
      %15 = arith.addf %12, %14 : vector<8x128xf32>
      %c0_14 = arith.constant 0 : index
      %c0_15 = arith.constant 0 : index
      %16 = vector.load %arg6[%c0_14, %c0_15] : memref<8x128xf32, #tpu.memory_space<vmem>>, vector<8x128xf32>
      tpu.vector_store %arg6[%c0_14, %c0_15], %15 {strides = array<i32>} : memref<8x128xf32, #tpu.memory_space<vmem>>, vector<8x128xf32>,
    } else {
    }
    return
  }
  func.func @transform_0(%arg0: i32, %arg1: i32, %arg2: i32) -> (i32, i32) {
    %c0_i32 = arith.constant 0 : i32
    return %arg1, %arg2 : i32, i32
  }
  func.func @transform_1(%arg0: i32, %arg1: i32, %arg2: i32) -> (i32, i32) {
    %c0_i32 = arith.constant 0 : i32
    return %arg2, %arg0 : i32, i32
  }
  func.func @transform_2(%arg0: i32, %arg1: i32, %arg2: i32) -> (i32, i32) {
    %c0_i32 = arith.constant 0 : i32
    %c0_i32_0 = arith.constant 0 : i32
    return %c0_i32, %arg0 : i32, i32
  }
  func.func @transform_3(%arg0: i32, %arg1: i32, %arg2: i32) -> (i32, i32) {
    %c0_i32 = arith.constant 0 : i32
    return %arg1, %arg0 : i32, i32
  }
}

</mosaic_0001>

<llo_original>
// kernel: tpu_custom_call.1
$region0: #{tpu_custom_call.1}
  #allocation0 [shape = 'u32[]', space=smem, size = 0x4, offset = 0x4, fixed_abs, tag = 'smem constant byte address 0x4 - core index']
  #allocation1 [shape = 'u32[144,128]{1,0:T(1,128)}', space=vmem, size = 0x12000, scoped, tag = 'internal scratch']
  #allocation2 [shape = 'f32[8,128]{1,0:T(8,128)}', space=vmem, size = 0x1000, scoped, tag = 'scratch operand']
  %s0 = inlined_call_operand.hbm [shape: f32[8,32], index: 0, kind: input, shape index: {}]
  %s1 = inlined_call_operand.hbm [shape: f32[32,128], index: 1, kind: input, shape index: {}]
  %s2 = inlined_call_operand.vmem [shape: f32[1,128], index: 2, kind: input, shape index: {}]
  %s3 = inlined_call_operand.hbm [shape: f32[8,128], index: 3, kind: output, shape index: {}]
  %s4 = sld [smem:[#allocation0]]
  $region38: #{tpu_custom_call.1} parent=0
    _
  %s6 = ssub.s32 1, %s4
  %s7 = scalar_select 0, %s6, %s4
  $region1: #{tpu_custom_call.1} parent=0
    #allocation3 [shape = 'u8[4096]{0}', space=vmem, size = 0x1000, scoped, tag = 'input window, operand 0, single buffered']
    #allocation4 [shape = 's32[1]{0}', space=sflag, size = 0x4, scoped, tag = 'scoped memory for tpu_custom_call.1']
    #allocation5 [shape = 's32[1]{0}', space=sflag, size = 0x4, scoped, tag = 'scoped memory for tpu_custom_call.1']
    #allocation6 [shape = 'u8[16384]{0}', space=vmem, size = 0x4000, scoped, tag = 'input window, operand 1, single buffered']
    #allocation7 [shape = 's32[1]{0}', space=sflag, size = 0x4, scoped, tag = 'scoped memory for tpu_custom_call.1']
    #allocation8 [shape = 'u8[4096]{0}', space=vmem, size = 0x1000, scoped, tag = 'output window, operand 0, single buffered']
    %8 = vsyncpa [#allocation4], 0
    %9 = vsyncpa [#allocation7], 0
    %10 = vsyncpa [#allocation5], 0
    // Predicated region
    $region2: #{tpu_custom_call.1} parent=1 // pred_check
      _
    $region3: #{tpu_custom_call.1} parent=1 // pred_check_branch
      %12 = sbr.rel (0) target = $region5
    $region4: #{tpu_custom_call.1} parent=1 // pred_region
      %s14 = ssub.s32 128, 128
      %15 = vsyncadd [#allocation4], %s14
      %s17 = sshll.u32 [#allocation3], 4
      %s18 = int_to_ptr.vmem [resolvable:$true] %s17
      %20 = dma.hbm_to_vmem [thread:$0]  %s0, 128, %s18, [#allocation4]
    $region5: #{tpu_custom_call.1} parent=1 // pred_fallthru
      _
    // Predicated region
    $region6: #{tpu_custom_call.1} parent=1 // pred_check
      _
    $region7: #{tpu_custom_call.1} parent=1 // pred_check_branch
      %22 = sbr.rel (0) target = $region9
    $region8: #{tpu_custom_call.1} parent=1 // pred_region
      %s24 = ssub.s32 512, 512
      %25 = vsyncadd [#allocation7], %s24
      %s26 = sshll.u32 [#allocation6], 4
      %s27 = int_to_ptr.vmem [resolvable:$true] %s26
      %32 = dma.hbm_to_vmem [thread:$0]  %s1, 512, %s27, [#allocation7], 128, 128, 8
    $region9: #{tpu_custom_call.1} parent=1 // pred_fallthru
      _
    // Predicated region
    $region10: #{tpu_custom_call.1} parent=1 // pred_check
      _
    $region11: #{tpu_custom_call.1} parent=1 // pred_check_branch
      %34 = sbr.rel (0) target = $region13
    $region12: #{tpu_custom_call.1} parent=1 // pred_region
      _
    $region13: #{tpu_custom_call.1} parent=1 // pred_fallthru
      _
    // Predicated region
    $region14: #{tpu_custom_call.1} parent=1 // pred_check
      _
    $region15: #{tpu_custom_call.1} parent=1 // pred_check_branch
      %36 = sbr.rel (0) target = $region17
    $region16: #{tpu_custom_call.1} parent=1 // pred_region
      %37 = dma.done [#allocation4], 128
    $region17: #{tpu_custom_call.1} parent=1 // pred_fallthru
      _
    // Predicated region
    $region18: #{tpu_custom_call.1} parent=1 // pred_check
      _
    $region19: #{tpu_custom_call.1} parent=1 // pred_check_branch
      %39 = sbr.rel (0) target = $region21
    $region20: #{tpu_custom_call.1} parent=1 // pred_region
      %40 = dma.done [#allocation7], 512
    $region21: #{tpu_custom_call.1} parent=1 // pred_fallthru
      _
    %p41 = scmp.eq.s32.totalorder 0, 0
    // Predicated region
    $region22: #{tpu_custom_call.1} parent=1 // pred_check
      %p42 = pneg %p41
    $region23: #{tpu_custom_call.1} parent=1 // pred_check_branch
      %44 = sbr.rel (%p42) target = $region25
    $region24: #{tpu_custom_call.1} parent=1 // pred_region
      %45 = vst [vmem:[#allocation2] sm:$0xff] 0.0
    $region25: #{tpu_custom_call.1} parent=1 // pred_fallthru
      _
    %v46 = vld [vmem:[#allocation3] sm:$0xff]
    %v47 = vld [vmem:[#allocation6] sm:$0xff]
    %v48 = vld [vmem:[#allocation6 + $0x8] sm:$0xff]
    %v49 = vld [vmem:[#allocation6 + $0x10] sm:$0xff]
    %v50 = vld [vmem:[#allocation6 + $0x18] sm:$0xff]
    %v51 = vld [vmem:[#allocation2] sm:$0xff]
    %vm52 = vcmask 261120
    %v54 = vsel %vm52, %v46, 0
    %56 = vmatprep.subr.mxu0 0.0
    %57 = vmatpush1.msra.mxu0 %v47
    %58 = vmatprep.subr.mxu0 0.0
    %59 = vmatpush1.msra.mxu0 %v48
    %60 = vmatprep.subr.mxu0 0.0
    %61 = vmatpush1.msra.mxu0 %v49
    %62 = vmatprep.subr.mxu0 0.0
    %63 = vmatpush1.msra.mxu0 %v50
    %64 = vmatprep.subr.mxu0 0.0
    %65 = vmatpush1.msra.mxu0 0.0
    %66 = vmatprep.subr.mxu0 0.0
    %67 = vmatpush1.msra.mxu0 0.0
    %68 = vmatprep.subr.mxu0 0.0
    %69 = vmatpush1.msra.mxu0 0.0
    %70 = vmatprep.subr.mxu0 0.0
    %71 = vmatpush1.msra.mxu0 0.0
    %72 = vmatprep.subr.mxu0 0.0
    %73 = vmatpush1.msra.mxu0 0.0
    %74 = vmatprep.subr.mxu0 0.0
    %75 = vmatpush1.msra.mxu0 0.0
    %76 = vmatprep.subr.mxu0 0.0
    %77 = vmatpush1.msra.mxu0 0.0
    %78 = vmatprep.subr.mxu0 0.0
    %79 = vmatpush1.msra.mxu0 0.0
    %80 = vmatprep.subr.mxu0 0.0
    %81 = vmatpush1.msra.mxu0 0.0
    %82 = vmatprep.subr.mxu0 0.0
    %83 = vmatpush1.msra.mxu0 0.0
    %84 = vmatprep.subr.mxu0 0.0
    %85 = vmatpush1.msra.mxu0 0.0
    %86 = vmatprep.subr.mxu0 0.0
    %87 = vmatpush1.msra.mxu0 0.0
    %88 = vmatprep.subr.mxu0 0.0
    %89 = vmatpush1.msra.mxu0 0.0
    %90 = vmatprep.subr.mxu0 0.0
    %91 = vmatpush1.msra.mxu0 0.0
    %92 = vmatprep.subr.mxu0 0.0
    %93 = vmatpush1.msra.mxu0 0.0
    %94 = vmatprep.subr.mxu0 0.0
    %95 = vmatpush1.msra.mxu0 0.0
    %96 = vmatprep.subr.mxu0 0.0
    %97 = vmatpush1.msra.mxu0 0.0
    %98 = vmatprep.subr.mxu0 0.0
    %99 = vmatpush1.msra.mxu0 0.0
    %100 = vmatprep.subr.mxu0 0.0
    %101 = vmatpush1.msra.mxu0 0.0
    %102 = vmatprep.subr.mxu0 0.0
    %103 = vmatpush1.msra.mxu0 0.0
    %104 = vmatprep.subr.mxu0 0.0
    %105 = vmatpush1.msra.mxu0 0.0
    %106 = vmatprep.subr.mxu0 0.0
    %107 = vmatpush1.msra.mxu0 0.0
    %108 = vmatprep.subr.mxu0 0.0
    %109 = vmatpush1.msra.mxu0 0.0
    %110 = vmatprep.subr.mxu0 0.0
    %111 = vmatpush1.msra.mxu0 0.0
    %112 = vmatprep.subr.mxu0 0.0
    %113 = vmatpush1.msra.mxu0 0.0
    %114 = vmatprep.subr.mxu0 0.0
    %115 = vmatpush1.msra.mxu0 0.0
    %116 = vmatprep.subr.mxu0 0.0
    %117 = vmatpush1.msra.mxu0 0.0
    %118 = vmatprep.subr.mxu0 0.0
    %119 = vmatpush1.msra.mxu0 0.0
    %120 = vmatprep.mubr.f32.mxu0 0.0
    %121 = vmatmul.mubr.f32.gmra.mrb[0].mxu0 %v54
    %v122 = vpop.f32.mrb[0].mxu0
    %v123 = vadd.f32 0.0, %v122
    %v124 = vpop.f32.mrb[0].mxu0
    %125 = vdwg.mxu0
    %v126 = vadd.f32 %v51, %v123
    %127 = vst [vmem:[#allocation2] sm:$0xff] %v126
    // Predicated region
    $region26: #{tpu_custom_call.1} parent=1 // pred_check
      %p128 = pneg %p41
    $region27: #{tpu_custom_call.1} parent=1 // pred_check_branch
      %130 = sbr.rel (%p128) target = $region29
    $region28: #{tpu_custom_call.1} parent=1 // pred_region
      %v131 = vld [vmem:[#allocation2] sm:$0xff]
      %v132 = vld [vmem:[%s2] sm:$0x1]
      %v134 = vlaneseq
      %v135 = vshrl.u32 %v134, 7
      %v136 = vsub.s32 0, %v135
      %v137 = vrot.slane %v132, %v136
      %v139 = vadd.f32 %v131, %v137
      %140 = vst [vmem:[#allocation8] sm:$0xff] %v139
    $region29: #{tpu_custom_call.1} parent=1 // pred_fallthru
      _
    // Predicated region
    $region30: #{tpu_custom_call.1} parent=1 // pred_check
      _
    $region31: #{tpu_custom_call.1} parent=1 // pred_check_branch
      %142 = sbr.rel (0) target = $region33
    $region32: #{tpu_custom_call.1} parent=1 // pred_region
      %s144 = ssub.s32 128, 128
      %145 = vsyncadd [#allocation5], %s144
      %s147 = sshll.u32 [#allocation8], 4
      %s148 = int_to_ptr.vmem [resolvable:$true] %s147
      %150 = dma.vmem_to_hbm [thread:$0]  %s148, 128, %s3, [#allocation5]
    $region33: #{tpu_custom_call.1} parent=1 // pred_fallthru
      _
    // Predicated region
    $region34: #{tpu_custom_call.1} parent=1 // pred_check
      _
    $region35: #{tpu_custom_call.1} parent=1 // pred_check_branch
      %152 = sbr.rel (0) target = $region37
    $region36: #{tpu_custom_call.1} parent=1 // pred_region
      %153 = dma.done [#allocation5], 128
    $region37: #{tpu_custom_call.1} parent=1 // pred_fallthru
      _
    %154 = vsyncpa [#allocation4], 1
    %155 = vsyncpa [#allocation7], 1
    %156 = vsyncpa [#allocation5], 1

</llo_original>
